<compile_context>
chip_gen: v7x
topology: tpu7x:2x2x1
jax: 0.10.0
libtpu: 0.0.40
codegen_flags: <defaults>
</compile_context>

<pallas_src>
import functools

import jax
import jax.numpy as jnp
from jax.experimental import pallas as pl
from jax.experimental.pallas import tpu as pltpu


# ---- packed-parameter slab layout (row regions are 8-sublane aligned) --------
# rows  0:16 , cols 0:2   -> W1^T (16,2)   ; col  2  -> b1 (16,)
# rows 16:48 , cols 0:16  -> W2^T (32,16)  ; col 16  -> b2 (32,)
# rows 48:64 , cols 0:32  -> W3^T (16,32)  ; col 32  -> b3 (16,)
# rows 64:66 , cols 0:16  -> W4^T (2,16)   ; col 16  -> b4 (2,)
_SLAB_SHAPE = (66, 33)


def mlp_kernel(xt_ref, p_ref, o_ref, *, mxu_dtype):
    xt = xt_ref[...]                                  # (2, TB) f32, lane-dense

    # Static views into the packed parameter slab.
    w1t = p_ref[0:16, 0:2]                            # (16, 2)   f32 (VPU path)
    b1 = p_ref[0:16, 2:3]                             # (16, 1)
    w2t = p_ref[16:48, 0:16].astype(mxu_dtype)        # (32, 16)  MXU operand
    b2 = p_ref[16:48, 16:17]                          # (32, 1)
    w3t = p_ref[48:64, 0:32].astype(mxu_dtype)        # (16, 32)  MXU operand
    b3 = p_ref[48:64, 32:33]                          # (16, 1)
    w4t = p_ref[64:66, 0:16].astype(mxu_dtype)        # (2, 16)   MXU operand
    b4 = p_ref[64:66, 16:17]                          # (2, 1)

    # fc1 (contraction K=2): VPU broadcast multiply-add in f32, skip the MXU.
    h = w1t[:, 0:1] * xt[0:1, :] + w1t[:, 1:2] * xt[1:2, :] + b1       # (16, TB)
    h = jnp.maximum(h, 0.0)

    # fc2 / fc3 / fc4 on the MXU: bf16 (default) inputs, f32 accumulation.
    # Bias adds + ReLU stay f32 on the VPU; results stay lane-dense in batch.
    h = jnp.dot(w2t, h.astype(mxu_dtype),
                preferred_element_type=jnp.float32) + b2               # (32, TB)
    h = jnp.maximum(h, 0.0)
    h = jnp.dot(w3t, h.astype(mxu_dtype),
                preferred_element_type=jnp.float32) + b3               # (16, TB)
    h = jnp.maximum(h, 0.0)
    out = jnp.dot(w4t, h.astype(mxu_dtype),
                  preferred_element_type=jnp.float32) + b4             # (2, TB)

    o_ref[...] = out.astype(o_ref.dtype)


def _round_up(n, m):
    return ((n + m - 1) // m) * m


def mlp_forward_t(xt, packed_params, *, tile_b=2048, mxu_dtype=jnp.bfloat16):
    """Feature-major forward.  xt: (2, B) float32 -> (2, B) float32.

    No transpose, no pad: uses a non-divisible batch grid; the final partial
    block's out-of-bounds output stores are masked by Pallas.
    """
    F, B = xt.shape
    assert F == 2 and packed_params.shape == _SLAB_SHAPE
    assert tile_b % 128 == 0

    tb = min(tile_b, _round_up(B, 128))    # lane-aligned tile, capped at tile_b
    grid = (pl.cdiv(B, tb),)               # last block may be partial (masked)

    kernel = functools.partial(mlp_kernel, mxu_dtype=mxu_dtype)
    return pl.pallas_call(
        kernel,
        out_shape=jax.ShapeDtypeStruct((2, B), jnp.float32),
        grid_spec=pltpu.PrefetchScalarGridSpec(
            num_scalar_prefetch=0,
            grid=grid,
            in_specs=[
                pl.BlockSpec((2, tb), lambda i: (0, i)),       # x^T batch tile
                pl.BlockSpec(_SLAB_SHAPE, lambda i: (0, 0)),   # params: 1 DMA, resident
            ],
            out_specs=pl.BlockSpec((2, tb), lambda i: (0, i)),
        ),
        compiler_params=pltpu.CompilerParams(
            dimension_semantics=("parallel",)),    # shards batch on v7x's 2 TCs
    )(xt, packed_params)


def mlp_forward(x, packed_params, *, tile_b=2048, mxu_dtype=jnp.bfloat16):
    """PyTorch-layout forward.  x: [B, 2] float32 -> [B, 2] float32.

    Thin shim over the feature-major core; prefer mlp_forward_t when the
    surrounding pipeline can keep tensors feature-major and skip the
    transposes entirely.
    """
    out_t = mlp_forward_t(x.T, packed_params, tile_b=tile_b, mxu_dtype=mxu_dtype)
    return out_t.T


def init_params():
    """Deterministic init mimicking nn.Linear U(-1/sqrt(fan_in), 1/sqrt(fan_in)).
    Weights stored (in, out); biases (out,)."""
    key = jax.random.PRNGKey(0)
    dims = [(2, 16), (16, 32), (32, 16), (16, 2)]
    params = {}
    for i, (fan_in, fan_out) in enumerate(dims, start=1):
        key, kw, kb = jax.random.split(key, 3)
        bound = 1.0 / jnp.sqrt(float(fan_in))
        params[f"w{i}"] = jax.random.uniform(
            kw, (fan_in, fan_out), jnp.float32, minval=-bound, maxval=bound)
        params[f"b{i}"] = jax.random.uniform(
            kb, (fan_out,), jnp.float32, minval=-bound, maxval=bound)
    return params


def pack_params(params):
    """Pack all weights (transposed to (out, in)) and biases into one f32 slab."""
    p = jnp.zeros(_SLAB_SHAPE, jnp.float32)
    p = p.at[0:16, 0:2].set(params["w1"].T)
    p = p.at[0:16, 2].set(params["b1"])
    p = p.at[16:48, 0:16].set(params["w2"].T)
    p = p.at[16:48, 16].set(params["b2"])
    p = p.at[48:64, 0:32].set(params["w3"].T)
    p = p.at[48:64, 32].set(params["b3"])
    p = p.at[64:66, 0:16].set(params["w4"].T)
    p = p.at[64:66, 16].set(params["b4"])
    return p


def mlp_reference(x, p):
    h = jnp.maximum(x @ p["w1"] + p["b1"], 0.0)
    h = jnp.maximum(h @ p["w2"] + p["b2"], 0.0)
    h = jnp.maximum(h @ p["w3"] + p["b3"], 0.0)
    return h @ p["w4"] + p["b4"]


if __name__ == "__main__":
    params = init_params()
    packed = pack_params(params)

    # 1) Small batch (module's natural usage), f32 MXU path -> exact-semantics
    #    check at tight tolerance.  Single partial block (B=8 < 128 lanes).
    x = jax.random.normal(jax.random.PRNGKey(0), (8, 2), dtype=jnp.float32)
    out = jax.block_until_ready(mlp_forward(x, packed, mxu_dtype=jnp.float32))
    ref = mlp_reference(x, params)
    assert out.shape == (8, 2)
    assert jnp.allclose(out, ref, atol=1e-4, rtol=1e-4)

    # 2) Non-divisible batch, single partial block, default bf16 MXU inputs.
    x2 = jax.random.normal(jax.random.PRNGKey(1), (300, 2), dtype=jnp.float32)
    out2 = jax.block_until_ready(mlp_forward(x2, packed))
    ref2 = mlp_reference(x2, params)
    assert out2.shape == (300, 2)
    assert jnp.allclose(out2, ref2, atol=5e-2, rtol=5e-2)

    # 3) Multi-step grid (2 full tiles + 1 masked partial tile), bf16 MXU path.
    x3 = jax.random.normal(jax.random.PRNGKey(2), (2500, 2), dtype=jnp.float32)
    out3 = jax.block_until_ready(mlp_forward(x3, packed, tile_b=1024))
    ref3 = mlp_reference(x3, params)
    assert out3.shape == (2500, 2)
    assert jnp.allclose(out3, ref3, atol=5e-2, rtol=5e-2)

    print("KERNEL_OK")
</pallas_src>

<mosaic_0001>
module attributes {stable_mosaic.version = 11 : i64} {
  func.func @mlp_kernel(%arg0: i32, %arg1: memref<2x128xf32, #tpu.memory_space<vmem>>, %arg2: memref<66x33xf32, #tpu.memory_space<vmem>>, %arg3: memref<2x128xf32, #tpu.memory_space<vmem>>) attributes {dimension_semantics = [#tpu.dimension_semantics<parallel>], iteration_bounds = array<i64: 1>, scalar_prefetch = 0 : i64, scratch_operands = 0 : i64, tpu.core_type = #tpu.core_type<tc>, window_params = [{transform_indices = @transform_0, window_bounds = array<i64: 2, 128>}, {pipeline_mode = #tpu.pipeline_mode<synchronous>, transform_indices = @transform_1, window_bounds = array<i64: 66, 33>}, {transform_indices = @transform_2, window_bounds = array<i64: 2, 128>}]} {
    %c0 = arith.constant 0 : index
    %c0_0 = arith.constant 0 : index
    %0 = vector.load %arg1[%c0, %c0_0] : memref<2x128xf32, #tpu.memory_space<vmem>>, vector<2x128xf32>
    %c0_1 = arith.constant 0 : index
    %c0_2 = arith.constant 0 : index
    %1 = vector.load %arg2[%c0_1, %c0_2] : memref<66x33xf32, #tpu.memory_space<vmem>>, vector<16x2xf32>
    %c0_3 = arith.constant 0 : index
    %c2 = arith.constant 2 : index
    %2 = vector.load %arg2[%c0_3, %c2] : memref<66x33xf32, #tpu.memory_space<vmem>>, vector<16x1xf32>
    %c16 = arith.constant 16 : index
    %c0_4 = arith.constant 0 : index
    %3 = vector.load %arg2[%c16, %c0_4] : memref<66x33xf32, #tpu.memory_space<vmem>>, vector<32x16xf32>
    %c16_5 = arith.constant 16 : index
    %c16_6 = arith.constant 16 : index
    %4 = vector.load %arg2[%c16_5, %c16_6] : memref<66x33xf32, #tpu.memory_space<vmem>>, vector<32x1xf32>
    %c48 = arith.constant 48 : index
    %c0_7 = arith.constant 0 : index
    %5 = vector.load %arg2[%c48, %c0_7] : memref<66x33xf32, #tpu.memory_space<vmem>>, vector<16x32xf32>
    %c48_8 = arith.constant 48 : index
    %c32 = arith.constant 32 : index
    %6 = vector.load %arg2[%c48_8, %c32] : memref<66x33xf32, #tpu.memory_space<vmem>>, vector<16x1xf32>
    %c64 = arith.constant 64 : index
    %c0_9 = arith.constant 0 : index
    %7 = vector.load %arg2[%c64, %c0_9] : memref<66x33xf32, #tpu.memory_space<vmem>>, vector<2x16xf32>
    %c64_10 = arith.constant 64 : index
    %c16_11 = arith.constant 16 : index
    %8 = vector.load %arg2[%c64_10, %c16_11] : memref<66x33xf32, #tpu.memory_space<vmem>>, vector<2x1xf32>
    %9 = vector.extract_strided_slice %1 {offsets = [0, 0], sizes = [16, 1], strides = [1, 1]} : vector<16x2xf32> to vector<16x1xf32>
    %10 = vector.extract_strided_slice %0 {offsets = [0, 0], sizes = [1, 128], strides = [1, 1]} : vector<2x128xf32> to vector<1x128xf32>
    %11 = vector.broadcast %9 : vector<16x1xf32> to vector<16x128xf32>
    %12 = vector.broadcast %10 : vector<1x128xf32> to vector<16x128xf32>
    %13 = arith.mulf %11, %12 : vector<16x128xf32>
    %14 = vector.extract_strided_slice %1 {offsets = [0, 1], sizes = [16, 1], strides = [1, 1]} : vector<16x2xf32> to vector<16x1xf32>
    %15 = vector.extract_strided_slice %0 {offsets = [1, 0], sizes = [1, 128], strides = [1, 1]} : vector<2x128xf32> to vector<1x128xf32>
    %16 = vector.broadcast %14 : vector<16x1xf32> to vector<16x128xf32>
    %17 = vector.broadcast %15 : vector<1x128xf32> to vector<16x128xf32>
    %18 = arith.mulf %16, %17 : vector<16x128xf32>
    %19 = arith.addf %13, %18 : vector<16x128xf32>
    %20 = vector.broadcast %2 : vector<16x1xf32> to vector<16x128xf32>
    %21 = arith.addf %19, %20 : vector<16x128xf32>
    %cst = arith.constant 0.000000e+00 : f32
    %22 = vector.broadcast %cst : f32 to vector<16x128xf32>
    %23 = arith.maximumf %21, %22 : vector<16x128xf32>
    %cst_12 = arith.constant dense<0.000000e+00> : vector<32x128xf32>
    %24 = tpu.matmul %3, %23, %cst_12 {dimension_numbers = #tpu.dot_dimension_numbers<[1], [0], [0], [1], [0, 0, 1, 1], [], []>} : vector<32x16xf32>, vector<16x128xf32>, vector<32x128xf32> -> vector<32x128xf32>
    %25 = vector.broadcast %4 : vector<32x1xf32> to vector<32x128xf32>
    %26 = arith.addf %24, %25 : vector<32x128xf32>
    %cst_13 = arith.constant 0.000000e+00 : f32
    %27 = vector.broadcast %cst_13 : f32 to vector<32x128xf32>
    %28 = arith.maximumf %26, %27 : vector<32x128xf32>
    %cst_14 = arith.constant dense<0.000000e+00> : vector<16x128xf32>
    %29 = tpu.matmul %5, %28, %cst_14 {dimension_numbers = #tpu.dot_dimension_numbers<[1], [0], [0], [1], [0, 0, 1, 1], [], []>} : vector<16x32xf32>, vector<32x128xf32>, vector<16x128xf32> -> vector<16x128xf32>
    %30 = vector.broadcast %6 : vector<16x1xf32> to vector<16x128xf32>
    %31 = arith.addf %29, %30 : vector<16x128xf32>
    %cst_15 = arith.constant 0.000000e+00 : f32
    %32 = vector.broadcast %cst_15 : f32 to vector<16x128xf32>
    %33 = arith.maximumf %31, %32 : vector<16x128xf32>
    %cst_16 = arith.constant dense<0.000000e+00> : vector<2x128xf32>
    %34 = tpu.matmul %7, %33, %cst_16 {dimension_numbers = #tpu.dot_dimension_numbers<[1], [0], [0], [1], [0, 0, 1, 1], [], []>} : vector<2x16xf32>, vector<16x128xf32>, vector<2x128xf32> -> vector<2x128xf32>
    %35 = vector.broadcast %8 : vector<2x1xf32> to vector<2x128xf32>
    %36 = arith.addf %34, %35 : vector<2x128xf32>
    %c0_17 = arith.constant 0 : index
    %c0_18 = arith.constant 0 : index
    %37 = vector.load %arg3[%c0_17, %c0_18] : memref<2x128xf32, #tpu.memory_space<vmem>>, vector<2x128xf32>
    tpu.vector_store %arg3[%c0_17, %c0_18], %36 {strides = array<i32>} : memref<2x128xf32, #tpu.memory_space<vmem>>, vector<2x128xf32>,
    return
  }
  func.func @transform_0(%arg0: i32) -> (i32, i32) {
    %c0_i32 = arith.constant 0 : i32
    %c0_i32_0 = arith.constant 0 : i32
    return %c0_i32, %arg0 : i32, i32
  }
  func.func @transform_1(%arg0: i32) -> (i32, i32) {
    %c0_i32 = arith.constant 0 : i32
    %c0_i32_0 = arith.constant 0 : i32
    %c0_i32_1 = arith.constant 0 : i32
    return %c0_i32, %c0_i32_0 : i32, i32
  }
  func.func @transform_2(%arg0: i32) -> (i32, i32) {
    %c0_i32 = arith.constant 0 : i32
    %c0_i32_0 = arith.constant 0 : i32
    return %c0_i32, %arg0 : i32, i32
  }
}

</mosaic_0001>

<llo_original>
// kernel: tpu_custom_call.1
$region0: #{tpu_custom_call.1}
  #allocation0 [shape = 'u32[]', space=smem, size = 0x4, offset = 0x4, fixed_abs, tag = 'smem constant byte address 0x4 - core index']
  #allocation1 [shape = 'u32[144,128]{1,0:T(1,128)}', space=vmem, size = 0x12000, scoped, tag = 'internal scratch']
  %s0 = inlined_call_operand.vmem [shape: f32[2,8], index: 0, kind: input, shape index: {}]
  %s1 = inlined_call_operand.vmem [shape: f32[66,33], index: 1, kind: input, shape index: {}]
  %s2 = inlined_call_operand.hbm [shape: f32[2,8], index: 2, kind: output, shape index: {}]
  %s3 = sld [smem:[#allocation0]]
  $region18: #{tpu_custom_call.1} parent=0
    _
  %s5 = ssub.s32 1, %s3
  %s6 = scalar_select 0, %s5, %s3
  $region1: #{tpu_custom_call.1} parent=0
    #allocation2 [shape = 'u8[1024]{0}', space=vmem, size = 0x400, scoped, tag = 'output window, operand 0, single buffered']
    #allocation3 [shape = 's32[1]{0}', space=sflag, size = 0x4, scoped, tag = 'scoped memory for tpu_custom_call.1']
    %7 = vsyncpa [#allocation3], 0
    // Predicated region
    $region2: #{tpu_custom_call.1} parent=1 // pred_check
      _
    $region3: #{tpu_custom_call.1} parent=1 // pred_check_branch
      %9 = sbr.rel (0) target = $region5
    $region4: #{tpu_custom_call.1} parent=1 // pred_region
      _
    $region5: #{tpu_custom_call.1} parent=1 // pred_fallthru
      _
    // Predicated region
    $region6: #{tpu_custom_call.1} parent=1 // pred_check
      _
    $region7: #{tpu_custom_call.1} parent=1 // pred_check_branch
      %11 = sbr.rel (0) target = $region9
    $region8: #{tpu_custom_call.1} parent=1 // pred_region
      _
    $region9: #{tpu_custom_call.1} parent=1 // pred_fallthru
      _
    %v12 = vld [vmem:[%s0] sm:$0x3]
    %v13 = vld [vmem:[%s1] sm:$0xff]
    %v14 = vld [vmem:[%s1 + $0x8] sm:$0xff]
    %v15 = vld [vmem:[%s1 + $0x10] sm:$0xff]
    %v16 = vld [vmem:[%s1 + $0x18] sm:$0xff]
    %v17 = vld [vmem:[%s1 + $0x20] sm:$0xff]
    %v18 = vld [vmem:[%s1 + $0x28] sm:$0xff]
    %v19 = vld [vmem:[%s1 + $0x30] sm:$0xff]
    %v20 = vld [vmem:[%s1 + $0x38] sm:$0xff]
    %v21 = vld [vmem:[%s1 + $0x40] sm:$0x3]
    %23 = vset.pattern.permute.xlu0 0
    %24 = vperm.xlu0 %23, %v13
    %v25 = vpop.permute.xlu0 %24
    %28 = vset.pattern.permute.xlu0 0
    %29 = vperm.xlu0 %28, %v14
    %v30 = vpop.permute.xlu0 %29
    %v32 = vlaneseq
    %v33 = vshrl.u32 %v32, 7
    %v34 = vsub.s32 0, %v33
    %v35 = vrot.slane %v12, %v34
    %v36 = vmul.f32 %v25, %v35
    %v37 = vmul.f32 %v30, %v35
    %38 = vset.pattern.permute.xlu0 1
    %39 = vperm.xlu0 %38, %v13
    %v40 = vpop.permute.xlu0 %39
    %42 = vset.pattern.permute.xlu0 1
    %43 = vperm.xlu0 %42, %v14
    %v44 = vpop.permute.xlu0 %43
    %v46 = vlaneseq
    %v47 = vshrl.u32 %v46, 7
    %v48 = vsub.s32 1, %v47
    %v49 = vrot.slane %v12, %v48
    %v50 = vmul.f32 %v40, %v49
    %v51 = vmul.f32 %v44, %v49
    %v52 = vadd.f32 %v36, %v50
    %v53 = vadd.f32 %v37, %v51
    %54 = vset.pattern.permute.xlu0 2
    %55 = vperm.xlu0 %54, %v13
    %v56 = vpop.permute.xlu0 %55
    %58 = vset.pattern.permute.xlu0 2
    %59 = vperm.xlu0 %58, %v14
    %v60 = vpop.permute.xlu0 %59
    %v62 = vadd.f32 %v52, %v56
    %v63 = vadd.f32 %v53, %v60
    %v64 = vmax.f32 %v62, 0.0
    %v65 = vmax.f32 %v63, 0.0
    %67 = vset.pattern.permute.xlu0 16
    %68 = vperm.xlu0 %67, %v15
    %v69 = vpop.permute.xlu0 %68
    %72 = vset.pattern.permute.xlu0 16
    %73 = vperm.xlu0 %72, %v16
    %v74 = vpop.permute.xlu0 %73
    %77 = vset.pattern.permute.xlu0 16
    %78 = vperm.xlu0 %77, %v17
    %v79 = vpop.permute.xlu0 %78
    %82 = vset.pattern.permute.xlu0 16
    %83 = vperm.xlu0 %82, %v18
    %v84 = vpop.permute.xlu0 %83
    %vm86 = vcmask 130048
    %v87 = vsel %vm86, %v15, 0
    %v89 = vsel %vm86, %v16, 0
    %v91 = vsel %vm86, %v17, 0
    %v93 = vsel %vm86, %v18, 0
    %95 = vmatprep.subr.mxu0 0.0
    %96 = vmatpush1.msra.mxu0 %v64
    %97 = vmatprep.subr.mxu0 0.0
    %98 = vmatpush1.msra.mxu0 %v65
    %99 = vmatprep.subr.mxu0 0.0
    %100 = vmatpush1.msra.mxu0 0.0
    %101 = vmatprep.subr.mxu0 0.0
    %102 = vmatpush1.msra.mxu0 0.0
    %103 = vmatprep.subr.mxu0 0.0
    %104 = vmatpush1.msra.mxu0 0.0
    %105 = vmatprep.subr.mxu0 0.0
    %106 = vmatpush1.msra.mxu0 0.0
    %107 = vmatprep.subr.mxu0 0.0
    %108 = vmatpush1.msra.mxu0 0.0
    %109 = vmatprep.subr.mxu0 0.0
    %110 = vmatpush1.msra.mxu0 0.0
    %111 = vmatprep.subr.mxu0 0.0
    %112 = vmatpush1.msra.mxu0 0.0
    %113 = vmatprep.subr.mxu0 0.0
    %114 = vmatpush1.msra.mxu0 0.0
    %115 = vmatprep.subr.mxu0 0.0
    %116 = vmatpush1.msra.mxu0 0.0
    %117 = vmatprep.subr.mxu0 0.0
    %118 = vmatpush1.msra.mxu0 0.0
    %119 = vmatprep.subr.mxu0 0.0
    %120 = vmatpush1.msra.mxu0 0.0
    %121 = vmatprep.subr.mxu0 0.0
    %122 = vmatpush1.msra.mxu0 0.0
    %123 = vmatprep.subr.mxu0 0.0
    %124 = vmatpush1.msra.mxu0 0.0
    %125 = vmatprep.subr.mxu0 0.0
    %126 = vmatpush1.msra.mxu0 0.0
    %127 = vmatprep.subr.mxu0 0.0
    %128 = vmatpush1.msra.mxu0 0.0
    %129 = vmatprep.subr.mxu0 0.0
    %130 = vmatpush1.msra.mxu0 0.0
    %131 = vmatprep.subr.mxu0 0.0
    %132 = vmatpush1.msra.mxu0 0.0
    %133 = vmatprep.subr.mxu0 0.0
    %134 = vmatpush1.msra.mxu0 0.0
    %135 = vmatprep.subr.mxu0 0.0
    %136 = vmatpush1.msra.mxu0 0.0
    %137 = vmatprep.subr.mxu0 0.0
    %138 = vmatpush1.msra.mxu0 0.0
    %139 = vmatprep.subr.mxu0 0.0
    %140 = vmatpush1.msra.mxu0 0.0
    %141 = vmatprep.subr.mxu0 0.0
    %142 = vmatpush1.msra.mxu0 0.0
    %143 = vmatprep.subr.mxu0 0.0
    %144 = vmatpush1.msra.mxu0 0.0
    %145 = vmatprep.subr.mxu0 0.0
    %146 = vmatpush1.msra.mxu0 0.0
    %147 = vmatprep.subr.mxu0 0.0
    %148 = vmatpush1.msra.mxu0 0.0
    %149 = vmatprep.subr.mxu0 0.0
    %150 = vmatpush1.msra.mxu0 0.0
    %151 = vmatprep.subr.mxu0 0.0
    %152 = vmatpush1.msra.mxu0 0.0
    %153 = vmatprep.subr.mxu0 0.0
    %154 = vmatpush1.msra.mxu0 0.0
    %155 = vmatprep.subr.mxu0 0.0
    %156 = vmatpush1.msra.mxu0 0.0
    %157 = vmatprep.subr.mxu0 0.0
    %158 = vmatpush1.msra.mxu0 0.0
    %159 = vmatprep.mubr.f32.mxu0 0.0
    %160 = vmatmul.mubr.f32.gmra.mrb[0].mxu0 %v87
    %v161 = vpop.f32.mrb[0].mxu0
    %v162 = vadd.f32 %v69, %v161
    %v163 = vpop.f32.mrb[0].mxu0
    %164 = vmatprep.mubr.f32.mxu0 0.0
    %165 = vmatmul.mubr.f32.gmra.mrb[0].mxu0 %v89
    %v166 = vpop.f32.mrb[0].mxu0
    %v167 = vadd.f32 %v74, %v166
    %v168 = vpop.f32.mrb[0].mxu0
    %169 = vmatprep.mubr.f32.mxu0 0.0
    %170 = vmatmul.mubr.f32.gmra.mrb[0].mxu0 %v91
    %v171 = vpop.f32.mrb[0].mxu0
    %v172 = vadd.f32 %v79, %v171
    %v173 = vpop.f32.mrb[0].mxu0
    %174 = vmatprep.mubr.f32.mxu0 0.0
    %175 = vmatmul.mubr.f32.gmra.mrb[0].mxu0 %v93
    %v176 = vpop.f32.mrb[0].mxu0
    %v177 = vadd.f32 %v84, %v176
    %v178 = vpop.f32.mrb[0].mxu0
    %179 = vdwg.mxu0
    %v180 = vmax.f32 %v162, 0.0
    %v181 = vmax.f32 %v167, 0.0
    %v182 = vmax.f32 %v172, 0.0
    %v183 = vmax.f32 %v177, 0.0
    %185 = vset.pattern.permute.xlu0 32
    %186 = vperm.xlu0 %185, %v19
    %v187 = vpop.permute.xlu0 %186
    %190 = vset.pattern.permute.xlu0 32
    %191 = vperm.xlu0 %190, %v20
    %v192 = vpop.permute.xlu0 %191
    %vm194 = vcmask 261120
    %v195 = vsel %vm194, %v19, 0
    %v197 = vsel %vm194, %v20, 0
    %199 = vmatprep.subr.mxu0 0.0
    %200 = vmatpush1.msra.mxu0 %v180
    %201 = vmatprep.subr.mxu0 0.0
    %202 = vmatpush1.msra.mxu0 %v181
    %203 = vmatprep.subr.mxu0 0.0
    %204 = vmatpush1.msra.mxu0 %v182
    %205 = vmatprep.subr.mxu0 0.0
    %206 = vmatpush1.msra.mxu0 %v183
    %207 = vmatprep.subr.mxu0 0.0
    %208 = vmatpush1.msra.mxu0 0.0
    %209 = vmatprep.subr.mxu0 0.0
    %210 = vmatpush1.msra.mxu0 0.0
    %211 = vmatprep.subr.mxu0 0.0
    %212 = vmatpush1.msra.mxu0 0.0
    %213 = vmatprep.subr.mxu0 0.0
    %214 = vmatpush1.msra.mxu0 0.0
    %215 = vmatprep.subr.mxu0 0.0
    %216 = vmatpush1.msra.mxu0 0.0
    %217 = vmatprep.subr.mxu0 0.0
    %218 = vmatpush1.msra.mxu0 0.0
    %219 = vmatprep.subr.mxu0 0.0
    %220 = vmatpush1.msra.mxu0 0.0
    %221 = vmatprep.subr.mxu0 0.0
    %222 = vmatpush1.msra.mxu0 0.0
    %223 = vmatprep.subr.mxu0 0.0
    %224 = vmatpush1.msra.mxu0 0.0
    %225 = vmatprep.subr.mxu0 0.0
    %226 = vmatpush1.msra.mxu0 0.0
    %227 = vmatprep.subr.mxu0 0.0
    %228 = vmatpush1.msra.mxu0 0.0
    %229 = vmatprep.subr.mxu0 0.0
    %230 = vmatpush1.msra.mxu0 0.0
    %231 = vmatprep.subr.mxu0 0.0
    %232 = vmatpush1.msra.mxu0 0.0
    %233 = vmatprep.subr.mxu0 0.0
    %234 = vmatpush1.msra.mxu0 0.0
    %235 = vmatprep.subr.mxu0 0.0
    %236 = vmatpush1.msra.mxu0 0.0
    %237 = vmatprep.subr.mxu0 0.0
    %238 = vmatpush1.msra.mxu0 0.0
    %239 = vmatprep.subr.mxu0 0.0
    %240 = vmatpush1.msra.mxu0 0.0
    %241 = vmatprep.subr.mxu0 0.0
    %242 = vmatpush1.msra.mxu0 0.0
    %243 = vmatprep.subr.mxu0 0.0
    %244 = vmatpush1.msra.mxu0 0.0
    %245 = vmatprep.subr.mxu0 0.0
    %246 = vmatpush1.msra.mxu0 0.0
    %247 = vmatprep.subr.mxu0 0.0
    %248 = vmatpush1.msra.mxu0 0.0
    %249 = vmatprep.subr.mxu0 0.0
    %250 = vmatpush1.msra.mxu0 0.0
    %251 = vmatprep.subr.mxu0 0.0
    %252 = vmatpush1.msra.mxu0 0.0
    %253 = vmatprep.subr.mxu0 0.0
    %254 = vmatpush1.msra.mxu0 0.0
    %255 = vmatprep.subr.mxu0 0.0
    %256 = vmatpush1.msra.mxu0 0.0
    %257 = vmatprep.subr.mxu0 0.0
    %258 = vmatpush1.msra.mxu0 0.0
    %259 = vmatprep.subr.mxu0 0.0
    %260 = vmatpush1.msra.mxu0 0.0
    %261 = vmatprep.subr.mxu0 0.0
    %262 = vmatpush1.msra.mxu0 0.0
    %263 = vmatprep.mubr.f32.mxu0 0.0
    %264 = vmatmul.mubr.f32.gmra.mrb[0].mxu0 %v195
    %v265 = vpop.f32.mrb[0].mxu0
    %v266 = vadd.f32 %v187, %v265
    %v267 = vpop.f32.mrb[0].mxu0
    %268 = vmatprep.mubr.f32.mxu0 0.0
    %269 = vmatmul.mubr.f32.gmra.mrb[0].mxu0 %v197
    %v270 = vpop.f32.mrb[0].mxu0
    %v271 = vadd.f32 %v192, %v270
    %v272 = vpop.f32.mrb[0].mxu0
    %273 = vdwg.mxu0
    %v274 = vmax.f32 %v266, 0.0
    %v275 = vmax.f32 %v271, 0.0
    %277 = vset.pattern.permute.xlu0 16
    %278 = vperm.xlu0 %277, %v21
    %v279 = vpop.permute.xlu0 %278
    %v281 = vsel %vm86, %v21, 0
    %283 = vmatprep.subr.mxu0 0.0
    %284 = vmatpush1.msra.mxu0 %v274
    %285 = vmatprep.subr.mxu0 0.0
    %286 = vmatpush1.msra.mxu0 %v275
    %287 = vmatprep.subr.mxu0 0.0
    %288 = vmatpush1.msra.mxu0 0.0
    %289 = vmatprep.subr.mxu0 0.0
    %290 = vmatpush1.msra.mxu0 0.0
    %291 = vmatprep.subr.mxu0 0.0
    %292 = vmatpush1.msra.mxu0 0.0
    %293 = vmatprep.subr.mxu0 0.0
    %294 = vmatpush1.msra.mxu0 0.0
    %295 = vmatprep.subr.mxu0 0.0
    %296 = vmatpush1.msra.mxu0 0.0
    %297 = vmatprep.subr.mxu0 0.0
    %298 = vmatpush1.msra.mxu0 0.0
    %299 = vmatprep.subr.mxu0 0.0
    %300 = vmatpush1.msra.mxu0 0.0
    %301 = vmatprep.subr.mxu0 0.0
    %302 = vmatpush1.msra.mxu0 0.0
    %303 = vmatprep.subr.mxu0 0.0
    %304 = vmatpush1.msra.mxu0 0.0
    %305 = vmatprep.subr.mxu0 0.0
    %306 = vmatpush1.msra.mxu0 0.0
    %307 = vmatprep.subr.mxu0 0.0
    %308 = vmatpush1.msra.mxu0 0.0
    %309 = vmatprep.subr.mxu0 0.0
    %310 = vmatpush1.msra.mxu0 0.0
    %311 = vmatprep.subr.mxu0 0.0
    %312 = vmatpush1.msra.mxu0 0.0
    %313 = vmatprep.subr.mxu0 0.0
    %314 = vmatpush1.msra.mxu0 0.0
    %315 = vmatprep.subr.mxu0 0.0
    %316 = vmatpush1.msra.mxu0 0.0
    %317 = vmatprep.subr.mxu0 0.0
    %318 = vmatpush1.msra.mxu0 0.0
    %319 = vmatprep.subr.mxu0 0.0
    %320 = vmatpush1.msra.mxu0 0.0
    %321 = vmatprep.subr.mxu0 0.0
    %322 = vmatpush1.msra.mxu0 0.0
    %323 = vmatprep.subr.mxu0 0.0
    %324 = vmatpush1.msra.mxu0 0.0
    %325 = vmatprep.subr.mxu0 0.0
    %326 = vmatpush1.msra.mxu0 0.0
    %327 = vmatprep.subr.mxu0 0.0
    %328 = vmatpush1.msra.mxu0 0.0
    %329 = vmatprep.subr.mxu0 0.0
    %330 = vmatpush1.msra.mxu0 0.0
    %331 = vmatprep.subr.mxu0 0.0
    %332 = vmatpush1.msra.mxu0 0.0
    %333 = vmatprep.subr.mxu0 0.0
    %334 = vmatpush1.msra.mxu0 0.0
    %335 = vmatprep.subr.mxu0 0.0
    %336 = vmatpush1.msra.mxu0 0.0
    %337 = vmatprep.subr.mxu0 0.0
    %338 = vmatpush1.msra.mxu0 0.0
    %339 = vmatprep.subr.mxu0 0.0
    %340 = vmatpush1.msra.mxu0 0.0
    %341 = vmatprep.subr.mxu0 0.0
    %342 = vmatpush1.msra.mxu0 0.0
    %343 = vmatprep.subr.mxu0 0.0
    %344 = vmatpush1.msra.mxu0 0.0
    %345 = vmatprep.subr.mxu0 0.0
    %346 = vmatpush1.msra.mxu0 0.0
    %347 = vmatprep.mubr.f32.mxu0 0.0
    %348 = vmatmul.mubr.f32.gmra.mrb[0].mxu0 %v281
    %v349 = vpop.f32.mrb[0].mxu0
    %v350 = vadd.f32 %v279, %v349
    %v351 = vpop.f32.mrb[0].mxu0
    %352 = vdwg.mxu0
    %353 = vst [vmem:[#allocation2] sm:$0x3] %v350
    // Predicated region
    $region10: #{tpu_custom_call.1} parent=1 // pred_check
      _
    $region11: #{tpu_custom_call.1} parent=1 // pred_check_branch
      %355 = sbr.rel (0) target = $region13
    $region12: #{tpu_custom_call.1} parent=1 // pred_region
      %s357 = ssub.s32 32, 32
      %358 = vsyncadd [#allocation3], %s357
      %s360 = sshll.u32 [#allocation2], 4
      %s361 = int_to_ptr.vmem [resolvable:$true] %s360
      %363 = dma.vmem_to_hbm [thread:$0]  %s361, 32, %s2, [#allocation3]
    $region13: #{tpu_custom_call.1} parent=1 // pred_fallthru
      _
    // Predicated region
    $region14: #{tpu_custom_call.1} parent=1 // pred_check
      _
    $region15: #{tpu_custom_call.1} parent=1 // pred_check_branch
      %365 = sbr.rel (0) target = $region17
    $region16: #{tpu_custom_call.1} parent=1 // pred_region
      %366 = dma.done [#allocation3], 32
    $region17: #{tpu_custom_call.1} parent=1 // pred_fallthru
      _
    %367 = vsyncpa [#allocation3], 1

</llo_original>
